<compile_context>
chip_gen: v7x
topology: tpu7x:2x2x1
jax: 0.10.0
libtpu: 0.0.40
codegen_flags: <defaults>
</compile_context>

<pallas_src>
import jax
import jax.numpy as jnp
from jax.experimental import pallas as pl
from jax.experimental.pallas import tpu as pltpu


_LANE = 128
_SUBLANE = 8
_MIN_TILE = 512        # keep HW tiles >= 512 lanes (roofline: ~85%+ of HBM BW)
_MAX_TILE = 8192       # amortize per-grid-step overhead; still tiny vs budget


# ---------------------------------------------------------------- kernels ----

def _make_pool_kernel(nb, hw, tile, nt_i, n_par):
    """Accumulate per-(row, branch) sums over the HW reduction axis."""
    needs_mask = (n_par * nt_i * tile != hw)     # static: tail / overhang tiles

    def kernel(*refs):
        x_refs = refs[:nb]                       # nb x (c_blk, tile)
        sum_ref = refs[nb]                       # (1, c_blk, nb) accumulator

        @pl.when(pl.program_id(2) == 0)
        def _init():
            sum_ref[...] = jnp.zeros_like(sum_ref)

        if needs_mask:
            col0 = (pl.program_id(0) * nt_i + pl.program_id(2)) * tile
            col = jax.lax.broadcasted_iota(jnp.int32, x_refs[0].shape, 1) + col0
            valid = col < hw

        parts = []
        for i in range(nb):                      # unrolled at trace time
            xv = x_refs[i][...].astype(jnp.float32)
            if needs_mask:
                xv = jnp.where(valid, xv, 0.0)
            parts.append(jnp.sum(xv, axis=-1, keepdims=True))     # (c_blk, 1)
        sum_ref[...] += jnp.concatenate(parts, axis=-1)[None]     # (1, c_blk, nb)

    return kernel


def _make_stream_kernel(nb):
    """out = relu(sum_i gate_i * x_i + bias) for one (c_blk, tile) block."""
    def kernel(*refs):
        x_refs = refs[:nb]                       # nb x (c_blk, tile)
        g_ref = refs[nb]                         # (nb, c_blk, 1)  BN scale folded
        b_ref = refs[nb + 1]                     # (c_blk, 1)      BN bias
        o_ref = refs[nb + 2]                     # (c_blk, tile)

        acc = b_ref[...].astype(jnp.float32)     # broadcasts over lanes
        for i in range(nb):                      # unrolled at trace time
            acc = acc + g_ref[i].astype(jnp.float32) * x_refs[i][...].astype(jnp.float32)
        o_ref[...] = jnp.maximum(acc, 0.0).astype(o_ref.dtype)

    return kernel


# ---------------------------------------------------------------- sizing -----

def _vmem_caps():
    """Per-generation VMEM limit + tile budget (v5e/v6e: 96/64 MiB, v7x: 48/32)."""
    try:
        cap = int(pltpu.get_tpu_info().vmem_capacity_bytes)
    except Exception:
        cap = 64 * 1024 * 1024
    cap = max(cap, 32 * 1024 * 1024)
    limit = min((cap * 3) // 4, 96 * 1024 * 1024)
    budget = min((limit * 2) // 3, 64 * 1024 * 1024)
    return limit, budget


def _pick_blocks(bc, hw, nb, itemsize, budget):
    """Pick (channel_block, hw_tile): c_blk multiple of 8 (or full B*C),
    tile multiple of 128 (or the full HW)."""
    per_elem = (nb + 1) * 2 * itemsize           # double-buffered inputs + output
    hw_lanes = pl.cdiv(hw, _LANE) * _LANE
    tile_full = (budget // (per_elem * bc)) // _LANE * _LANE
    if tile_full >= min(_MIN_TILE, hw_lanes) or bc <= _SUBLANE:
        c_blk = bc                               # all rows in one block
        tile = min(max(tile_full, _LANE), _MAX_TILE)
    else:
        # Block channels so the HW tile (DMA/lane efficiency dim) stays large.
        c_blk = (budget // (per_elem * _MIN_TILE)) // _SUBLANE * _SUBLANE
        c_blk = max(_SUBLANE, min(c_blk, bc))
        tile = (budget // (per_elem * c_blk)) // _LANE * _LANE
        tile = min(max(tile, _LANE), _MAX_TILE)
    if tile >= hw:
        tile = hw                                # single full-width block
    return c_blk, tile


# ---------------------------------------------------------------- wrapper ----

def cab_improve(xs, w1, w2, bn_gamma, bn_beta, bn_mean, bn_var, eps=1e-5,
                vmem_budget=None, vmem_limit=None):
    """xs: list of 5 NCHW arrays [B, C, H, W].
    w1: [5, C, 5C] (conv_i1 1x1 weights, squeezed), w2: [5, C, C] (conv_i2)."""
    nb = len(xs)
    B, C, H, W = xs[0].shape
    HW = H * W
    BC = B * C
    dtype = xs[0].dtype
    itemsize = jnp.dtype(dtype).itemsize

    auto_limit, auto_budget = _vmem_caps()
    limit = auto_limit if vmem_limit is None else vmem_limit
    budget = auto_budget if vmem_budget is None else vmem_budget

    c_blk, tile = _pick_blocks(BC, HW, nb, itemsize, budget)
    nc = pl.cdiv(BC, c_blk)
    nt = pl.cdiv(HW, tile)

    # Free, contiguous reshapes — no extra HBM traffic (no stack / no pad).
    xflat = [xi.reshape(BC, HW) for xi in xs]

    # -------- pass 1: global pooling as a tiled sum reduction over HW --------
    # Leading 2-way HW split ("parallel") lets both v7x TensorCores pool.
    n_par = 2 if nt >= 2 else 1
    nt_i = pl.cdiv(nt, n_par)
    need_clamp = (n_par * nt_i != nt)            # overhang tiles when nt is odd

    if need_clamp:
        def x_map_pool(s, c, t):
            # Overhang steps re-read the last valid block; the in-kernel mask
            # (logical column >= HW) zeroes their contribution.
            return (c, jnp.minimum(s * nt_i + t, nt - 1))
    else:
        def x_map_pool(s, c, t):
            return (c, s * nt_i + t)

    partials = pl.pallas_call(
        _make_pool_kernel(nb, HW, tile, nt_i, n_par),
        out_shape=jax.ShapeDtypeStruct((n_par, BC, nb), jnp.float32),
        grid=(n_par, nc, nt_i),
        in_specs=[pl.BlockSpec((c_blk, tile), x_map_pool)] * nb,
        out_specs=pl.BlockSpec((1, c_blk, nb), lambda s, c, t: (s, c, 0)),
        compiler_params=pltpu.CompilerParams(
            dimension_semantics=("parallel", "parallel", "arbitrary"),
            vmem_limit_bytes=limit),
    )(*xflat)
    pool_sum = jnp.sum(partials, axis=0)                         # [BC, nb]

    # -------- gating (tiny, plain XLA): ten 1x1 convs == two batched matmuls --
    pooled = jnp.transpose(pool_sum.reshape(B, C, nb), (0, 2, 1)).reshape(B, nb * C) / HW
    w1f = w1.astype(jnp.float32)                                 # [nb, C, nb*C]
    w2f = w2.astype(jnp.float32)                                 # [nb, C, C]
    h = jnp.maximum(jnp.einsum('bk,ick->bic', pooled, w1f), 0.0)  # [B, nb, C]
    s = jax.nn.sigmoid(jnp.einsum('bic,idc->bid', h, w2f))        # [B, nb, C]

    # bn11 (eval mode) folded: scale into the gates, bias added once per element.
    inv_std = 1.0 / jnp.sqrt(bn_var.astype(jnp.float32) + eps)
    scale = bn_gamma.astype(jnp.float32) * inv_std               # [C]
    bias_c = bn_beta.astype(jnp.float32) - bn_mean.astype(jnp.float32) * scale
    gates = jnp.transpose(s * scale[None, None, :], (1, 0, 2)).reshape(nb, BC, 1)
    bias = jnp.broadcast_to(bias_c[None, :], (B, C)).reshape(BC, 1)

    # -------- pass 2: stream x once, fused scale-sum + BN bias + ReLU --------
    out = pl.pallas_call(
        _make_stream_kernel(nb),
        out_shape=jax.ShapeDtypeStruct((BC, HW), dtype),
        grid=(nc, nt),
        in_specs=[pl.BlockSpec((c_blk, tile), lambda c, t: (c, t))] * nb
                 + [pl.BlockSpec((nb, c_blk, 1), lambda c, t: (0, c, 0)),
                    pl.BlockSpec((c_blk, 1), lambda c, t: (c, 0))],
        out_specs=pl.BlockSpec((c_blk, tile), lambda c, t: (c, t)),
        compiler_params=pltpu.CompilerParams(
            dimension_semantics=("parallel", "parallel"),
            vmem_limit_bytes=limit),
    )(*xflat, gates, bias)

    return out.reshape(B, C, H, W)


# -------------------------------------------------------------- reference ----

def cab_improve_reference(xs, w1, w2, bn_gamma, bn_beta, bn_mean, bn_var, eps=1e-5):
    """Pure-JAX reference mirroring the PyTorch forward (bn11 in eval mode)."""
    B, C, H, W = xs[0].shape
    x_cat = jnp.concatenate(xs, axis=1)                   # [B, 5C, H, W]
    pooled = jnp.mean(x_cat, axis=(2, 3))                 # [B, 5C]
    acc = jnp.zeros((B, C, H, W), jnp.float32)
    for i in range(5):
        h = jnp.maximum(pooled @ w1[i].T, 0.0)            # [B, C]
        s = jax.nn.sigmoid(h @ w2[i].T)                   # [B, C]
        acc = acc + s[:, :, None, None] * xs[i]
    y = (acc - bn_mean[None, :, None, None]) / jnp.sqrt(
        bn_var[None, :, None, None] + eps)
    y = y * bn_gamma[None, :, None, None] + bn_beta[None, :, None, None]
    return jnp.maximum(y, 0.0)


# -------------------------------------------------------------------- test ---

def _run_case(key, B, C, H, W, vmem_budget=None):
    ks = jax.random.split(key, 10)
    xs = [jax.random.normal(ks[i], (B, C, H, W), jnp.float32) for i in range(5)]
    w1 = jax.random.normal(ks[5], (5, C, 5 * C), jnp.float32) * 0.2   # conv_i1
    w2 = jax.random.normal(ks[6], (5, C, C), jnp.float32) * 0.2       # conv_i2
    bn_gamma = 1.0 + 0.1 * jax.random.normal(ks[7], (C,), jnp.float32)
    bn_beta = 0.1 * jax.random.normal(ks[8], (C,), jnp.float32)
    bn_mean = 0.05 * jax.random.normal(ks[9], (C,), jnp.float32)
    bn_var = jnp.ones((C,), jnp.float32) * 0.9

    out = jax.block_until_ready(
        cab_improve(xs, w1, w2, bn_gamma, bn_beta, bn_mean, bn_var,
                    vmem_budget=vmem_budget))
    ref = cab_improve_reference(xs, w1, w2, bn_gamma, bn_beta, bn_mean, bn_var)

    assert out.shape == (B, C, H, W)
    err = float(jnp.max(jnp.abs(out - ref)))
    assert jnp.allclose(out, ref, atol=1e-4, rtol=1e-4), f"max abs err {err}"


if __name__ == "__main__":
    key = jax.random.PRNGKey(0)
    # (B, C, H, W, vmem_budget_override) — overrides keep the tiling paths
    # deterministic across TPU generations so every code path gets exercised.
    cases = [
        (2, 4, 16, 16, None),         # spec-sized toy shape: single full block
        (2, 8, 64, 64, 1572864),      # nt=2: even 2-way HW split in pass 1
        (2, 4, 12, 13, None),         # HW not a multiple of 128: full-width block
        (1, 8, 72, 72, 786432),       # nt=3 (odd): overhang clamp + tail masking
        (2, 10, 30, 30, 196608),      # channel blocking + partial channel block
        (2, 16, 128, 128, None),      # auto budget path, multi-tile streaming
    ]
    for idx, (B, C, H, W, budget) in enumerate(cases):
        _run_case(jax.random.fold_in(key, idx), B, C, H, W, vmem_budget=budget)
    print("KERNEL_OK")
</pallas_src>

<mosaic_0001>
module attributes {stable_mosaic.version = 11 : i64} {
  func.func @kernel(%arg0: i32, %arg1: i32, %arg2: i32, %arg3: memref<8x256xf32, #tpu.memory_space<vmem>>, %arg4: memref<8x256xf32, #tpu.memory_space<vmem>>, %arg5: memref<8x256xf32, #tpu.memory_space<vmem>>, %arg6: memref<8x256xf32, #tpu.memory_space<vmem>>, %arg7: memref<8x256xf32, #tpu.memory_space<vmem>>, %arg8: memref<1x8x5xf32, #tpu.memory_space<vmem>>) attributes {dimension_semantics = [#tpu.dimension_semantics<parallel>, #tpu.dimension_semantics<parallel>, #tpu.dimension_semantics<arbitrary>], iteration_bounds = array<i64: 1, 1, 1>, scalar_prefetch = 0 : i64, scratch_operands = 0 : i64, tpu.core_type = #tpu.core_type<tc>, window_params = [{transform_indices = @transform_0, window_bounds = array<i64: 8, 256>}, {transform_indices = @transform_1, window_bounds = array<i64: 8, 256>}, {transform_indices = @transform_2, window_bounds = array<i64: 8, 256>}, {transform_indices = @transform_3, window_bounds = array<i64: 8, 256>}, {transform_indices = @transform_4, window_bounds = array<i64: 8, 256>}, {transform_indices = @transform_5, window_bounds = array<i64: 1, 8, 5>}]} {
    %c0_i32 = arith.constant 0 : i32
    %0 = arith.cmpi eq, %arg2, %c0_i32 : i32
    %1 = arith.extui %0 : i1 to i32
    %c0_i32_0 = arith.constant 0 : i32
    %2 = arith.cmpi ne, %1, %c0_i32_0 : i32
    scf.if %2 {
      %cst_20 = arith.constant 0.000000e+00 : f32
      %23 = vector.broadcast %cst_20 : f32 to vector<1x8x5xf32>
      %c0_21 = arith.constant 0 : index
      %c0_22 = arith.constant 0 : index
      %c0_23 = arith.constant 0 : index
      %24 = vector.load %arg8[%c0_21, %c0_22, %c0_23] : memref<1x8x5xf32, #tpu.memory_space<vmem>>, vector<1x8x5xf32>
      tpu.vector_store %arg8[%c0_21, %c0_22, %c0_23], %23 {strides = array<i32>} : memref<1x8x5xf32, #tpu.memory_space<vmem>>, vector<1x8x5xf32>,
    } else {
    }
    %c0 = arith.constant 0 : index
    %c0_1 = arith.constant 0 : index
    %3 = vector.load %arg3[%c0, %c0_1] : memref<8x256xf32, #tpu.memory_space<vmem>>, vector<8x256xf32>
    %cst = arith.constant dense<0.000000e+00> : vector<8xf32>
    %4 = vector.multi_reduction <add>, %3, %cst [1] : vector<8x256xf32> to vector<8xf32>
    %5 = vector.shape_cast %4 : vector<8xf32> to vector<8x1xf32>
    %c0_2 = arith.constant 0 : index
    %c0_3 = arith.constant 0 : index
    %6 = vector.load %arg4[%c0_2, %c0_3] : memref<8x256xf32, #tpu.memory_space<vmem>>, vector<8x256xf32>
    %cst_4 = arith.constant dense<0.000000e+00> : vector<8xf32>
    %7 = vector.multi_reduction <add>, %6, %cst_4 [1] : vector<8x256xf32> to vector<8xf32>
    %8 = vector.shape_cast %7 : vector<8xf32> to vector<8x1xf32>
    %c0_5 = arith.constant 0 : index
    %c0_6 = arith.constant 0 : index
    %9 = vector.load %arg5[%c0_5, %c0_6] : memref<8x256xf32, #tpu.memory_space<vmem>>, vector<8x256xf32>
    %cst_7 = arith.constant dense<0.000000e+00> : vector<8xf32>
    %10 = vector.multi_reduction <add>, %9, %cst_7 [1] : vector<8x256xf32> to vector<8xf32>
    %11 = vector.shape_cast %10 : vector<8xf32> to vector<8x1xf32>
    %c0_8 = arith.constant 0 : index
    %c0_9 = arith.constant 0 : index
    %12 = vector.load %arg6[%c0_8, %c0_9] : memref<8x256xf32, #tpu.memory_space<vmem>>, vector<8x256xf32>
    %cst_10 = arith.constant dense<0.000000e+00> : vector<8xf32>
    %13 = vector.multi_reduction <add>, %12, %cst_10 [1] : vector<8x256xf32> to vector<8xf32>
    %14 = vector.shape_cast %13 : vector<8xf32> to vector<8x1xf32>
    %c0_11 = arith.constant 0 : index
    %c0_12 = arith.constant 0 : index
    %15 = vector.load %arg7[%c0_11, %c0_12] : memref<8x256xf32, #tpu.memory_space<vmem>>, vector<8x256xf32>
    %cst_13 = arith.constant dense<0.000000e+00> : vector<8xf32>
    %16 = vector.multi_reduction <add>, %15, %cst_13 [1] : vector<8x256xf32> to vector<8xf32>
    %17 = vector.shape_cast %16 : vector<8xf32> to vector<8x1xf32>
    %c0_14 = arith.constant 0 : index
    %c0_15 = arith.constant 0 : index
    %c0_16 = arith.constant 0 : index
    %18 = vector.load %arg8[%c0_14, %c0_15, %c0_16] : memref<1x8x5xf32, #tpu.memory_space<vmem>>, vector<1x8x5xf32>
    %19 = tpu.concatenate %5, %8, %11, %14, %17 in 1 : vector<8x1xf32>, vector<8x1xf32>, vector<8x1xf32>, vector<8x1xf32>, vector<8x1xf32> -> vector<8x5xf32>
    %20 = vector.shape_cast %19 : vector<8x5xf32> to vector<1x8x5xf32>
    %21 = arith.addf %18, %20 : vector<1x8x5xf32>
    %c0_17 = arith.constant 0 : index
    %c0_18 = arith.constant 0 : index
    %c0_19 = arith.constant 0 : index
    %22 = vector.load %arg8[%c0_17, %c0_18, %c0_19] : memref<1x8x5xf32, #tpu.memory_space<vmem>>, vector<1x8x5xf32>
    tpu.vector_store %arg8[%c0_17, %c0_18, %c0_19], %21 {strides = array<i32>} : memref<1x8x5xf32, #tpu.memory_space<vmem>>, vector<1x8x5xf32>,
    return
  }
  func.func @transform_0(%arg0: i32, %arg1: i32, %arg2: i32) -> (i32, i32) {
    %c1_i32 = arith.constant 1 : i32
    %0 = arith.muli %arg0, %c1_i32 : i32
    %1 = arith.addi %0, %arg2 : i32
    %c0_i32 = arith.constant 0 : i32
    return %arg1, %1 : i32, i32
  }
  func.func @transform_1(%arg0: i32, %arg1: i32, %arg2: i32) -> (i32, i32) {
    %c1_i32 = arith.constant 1 : i32
    %0 = arith.muli %arg0, %c1_i32 : i32
    %1 = arith.addi %0, %arg2 : i32
    %c0_i32 = arith.constant 0 : i32
    return %arg1, %1 : i32, i32
  }
  func.func @transform_2(%arg0: i32, %arg1: i32, %arg2: i32) -> (i32, i32) {
    %c1_i32 = arith.constant 1 : i32
    %0 = arith.muli %arg0, %c1_i32 : i32
    %1 = arith.addi %0, %arg2 : i32
    %c0_i32 = arith.constant 0 : i32
    return %arg1, %1 : i32, i32
  }
  func.func @transform_3(%arg0: i32, %arg1: i32, %arg2: i32) -> (i32, i32) {
    %c1_i32 = arith.constant 1 : i32
    %0 = arith.muli %arg0, %c1_i32 : i32
    %1 = arith.addi %0, %arg2 : i32
    %c0_i32 = arith.constant 0 : i32
    return %arg1, %1 : i32, i32
  }
  func.func @transform_4(%arg0: i32, %arg1: i32, %arg2: i32) -> (i32, i32) {
    %c1_i32 = arith.constant 1 : i32
    %0 = arith.muli %arg0, %c1_i32 : i32
    %1 = arith.addi %0, %arg2 : i32
    %c0_i32 = arith.constant 0 : i32
    return %arg1, %1 : i32, i32
  }
  func.func @transform_5(%arg0: i32, %arg1: i32, %arg2: i32) -> (i32, i32, i32) {
    %c0_i32 = arith.constant 0 : i32
    %c0_i32_0 = arith.constant 0 : i32
    return %arg0, %arg1, %c0_i32 : i32, i32, i32
  }
}

</mosaic_0001>

<llo_original>
// kernel: tpu_custom_call.1
$region0: #{tpu_custom_call.1}
  #allocation0 [shape = 'u32[]', space=smem, size = 0x4, offset = 0x4, fixed_abs, tag = 'smem constant byte address 0x4 - core index']
  #allocation1 [shape = 'u32[144,128]{1,0:T(1,128)}', space=vmem, size = 0x12000, scoped, tag = 'internal scratch']
  %s0 = inlined_call_operand.hbm [shape: f32[8,256], index: 0, kind: input, shape index: {}]
  %s1 = inlined_call_operand.hbm [shape: f32[8,256], index: 1, kind: input, shape index: {}]
  %s2 = inlined_call_operand.hbm [shape: f32[8,256], index: 2, kind: input, shape index: {}]
  %s3 = inlined_call_operand.hbm [shape: f32[8,256], index: 3, kind: input, shape index: {}]
  %s4 = inlined_call_operand.hbm [shape: f32[8,256], index: 4, kind: input, shape index: {}]
  %s5 = inlined_call_operand.vmem [shape: f32[1,8,5], index: 5, kind: output, shape index: {}]
  %s6 = sld [smem:[#allocation0]]
  $region54: #{tpu_custom_call.1} parent=0
    _
  %s8 = ssub.s32 1, %s6
  %s9 = scalar_select 0, %s8, %s6
  $region1: #{tpu_custom_call.1} parent=0
    #allocation2 [shape = 'u8[8192]{0}', space=vmem, size = 0x2000, scoped, tag = 'input window, operand 0, single buffered']
    #allocation3 [shape = 's32[1]{0}', space=sflag, size = 0x4, scoped, tag = 'scoped memory for tpu_custom_call.1']
    #allocation4 [shape = 'u8[8192]{0}', space=vmem, size = 0x2000, scoped, tag = 'input window, operand 1, single buffered']
    #allocation5 [shape = 's32[1]{0}', space=sflag, size = 0x4, scoped, tag = 'scoped memory for tpu_custom_call.1']
    #allocation6 [shape = 'u8[8192]{0}', space=vmem, size = 0x2000, scoped, tag = 'input window, operand 2, single buffered']
    #allocation7 [shape = 'u8[8192]{0}', space=vmem, size = 0x2000, scoped, tag = 'input window, operand 3, single buffered']
    #allocation8 [shape = 's32[1]{0}', space=sflag, size = 0x4, scoped, tag = 'scoped memory for tpu_custom_call.1']
    #allocation9 [shape = 'u8[8192]{0}', space=vmem, size = 0x2000, scoped, tag = 'input window, operand 4, single buffered']
    %10 = vsyncpa [#allocation3], 0
    %11 = vsyncpa [#allocation5], 0
    %12 = vsyncpa [#allocation8], 0
    // Predicated region
    $region2: #{tpu_custom_call.1} parent=1 // pred_check
      _
    $region3: #{tpu_custom_call.1} parent=1 // pred_check_branch
      %14 = sbr.rel (0) target = $region5
    $region4: #{tpu_custom_call.1} parent=1 // pred_region
      %s15 = sadd.s32 0, 0
      %s16 = smul.u32 2, %s15
      %s18 = ssub.s32 256, 256
      %19 = vsyncadd [#allocation3], %s18
      %s20 = smul.addr %s16, 128
      %s21 = scalar_lea.hbm %s0, %s20
      %s23 = sshll.u32 [#allocation2], 4
      %s24 = int_to_ptr.vmem [resolvable:$true] %s23
      %26 = dma.hbm_to_vmem [thread:$0]  %s21, 256, %s24, [#allocation3]
    $region5: #{tpu_custom_call.1} parent=1 // pred_fallthru
      _
    // Predicated region
    $region6: #{tpu_custom_call.1} parent=1 // pred_check
      _
    $region7: #{tpu_custom_call.1} parent=1 // pred_check_branch
      %28 = sbr.rel (0) target = $region9
    $region8: #{tpu_custom_call.1} parent=1 // pred_region
      %s29 = sadd.s32 0, 0
      %s30 = smul.u32 2, %s29
      %s32 = ssub.s32 256, 256
      %33 = vsyncadd [#allocation5], %s32
      %s34 = smul.addr %s30, 128
      %s35 = scalar_lea.hbm %s1, %s34
      %s37 = sshll.u32 [#allocation4], 4
      %s38 = int_to_ptr.vmem [resolvable:$true] %s37
      %40 = dma.hbm_to_vmem [thread:$0]  %s35, 256, %s38, [#allocation5]
    $region9: #{tpu_custom_call.1} parent=1 // pred_fallthru
      _
    // Predicated region
    $region10: #{tpu_custom_call.1} parent=1 // pred_check
      _
    $region11: #{tpu_custom_call.1} parent=1 // pred_check_branch
      %42 = sbr.rel (0) target = $region13
    $region12: #{tpu_custom_call.1} parent=1 // pred_region
      %s43 = sadd.s32 0, 0
      %s44 = smul.u32 2, %s43
      %s46 = ssub.s32 256, 256
      %47 = vsyncadd [#allocation5], %s46
      %s48 = smul.addr %s44, 128
      %s49 = scalar_lea.hbm %s2, %s48
      %s51 = sshll.u32 [#allocation6], 4
      %s52 = int_to_ptr.vmem [resolvable:$true] %s51
      %54 = dma.hbm_to_vmem [thread:$0]  %s49, 256, %s52, [#allocation5]
    $region13: #{tpu_custom_call.1} parent=1 // pred_fallthru
      _
    // Predicated region
    $region14: #{tpu_custom_call.1} parent=1 // pred_check
      _
    $region15: #{tpu_custom_call.1} parent=1 // pred_check_branch
      %56 = sbr.rel (0) target = $region17
    $region16: #{tpu_custom_call.1} parent=1 // pred_region
      %s57 = sadd.s32 0, 0
      %s58 = smul.u32 2, %s57
      %s60 = ssub.s32 256, 256
      %61 = vsyncadd [#allocation8], %s60
      %s62 = smul.addr %s58, 128
      %s63 = scalar_lea.hbm %s3, %s62
      %s65 = sshll.u32 [#allocation7], 4
      %s66 = int_to_ptr.vmem [resolvable:$true] %s65
      %68 = dma.hbm_to_vmem [thread:$0]  %s63, 256, %s66, [#allocation8]
    $region17: #{tpu_custom_call.1} parent=1 // pred_fallthru
      _
    // Predicated region
    $region18: #{tpu_custom_call.1} parent=1 // pred_check
      _
    $region19: #{tpu_custom_call.1} parent=1 // pred_check_branch
      %70 = sbr.rel (0) target = $region21
    $region20: #{tpu_custom_call.1} parent=1 // pred_region
      %s71 = sadd.s32 0, 0
      %s72 = smul.u32 2, %s71
      %s74 = ssub.s32 256, 256
      %75 = vsyncadd [#allocation8], %s74
      %s76 = smul.addr %s72, 128
      %s77 = scalar_lea.hbm %s4, %s76
      %s79 = sshll.u32 [#allocation9], 4
      %s80 = int_to_ptr.vmem [resolvable:$true] %s79
      %82 = dma.hbm_to_vmem [thread:$0]  %s77, 256, %s80, [#allocation8]
    $region21: #{tpu_custom_call.1} parent=1 // pred_fallthru
      _
    // Predicated region
    $region22: #{tpu_custom_call.1} parent=1 // pred_check
      _
    $region23: #{tpu_custom_call.1} parent=1 // pred_check_branch
      %84 = sbr.rel (0) target = $region25
    $region24: #{tpu_custom_call.1} parent=1 // pred_region
      %85 = dma.done [#allocation3], 256
    $region25: #{tpu_custom_call.1} parent=1 // pred_fallthru
      _
    // Predicated region
    $region26: #{tpu_custom_call.1} parent=1 // pred_check
      _
    $region27: #{tpu_custom_call.1} parent=1 // pred_check_branch
      %87 = sbr.rel (0) target = $region29
    $region28: #{tpu_custom_call.1} parent=1 // pred_region
      %88 = dma.done [#allocation5], 256
    $region29: #{tpu_custom_call.1} parent=1 // pred_fallthru
      _
    // Predicated region
    $region30: #{tpu_custom_call.1} parent=1 // pred_check
      _
    $region31: #{tpu_custom_call.1} parent=1 // pred_check_branch
      %90 = sbr.rel (0) target = $region33
    $region32: #{tpu_custom_call.1} parent=1 // pred_region
      %91 = dma.done [#allocation5], 256
    $region33: #{tpu_custom_call.1} parent=1 // pred_fallthru
      _
    // Predicated region
    $region34: #{tpu_custom_call.1} parent=1 // pred_check
      _
    $region35: #{tpu_custom_call.1} parent=1 // pred_check_branch
      %93 = sbr.rel (0) target = $region37
    $region36: #{tpu_custom_call.1} parent=1 // pred_region
      %94 = dma.done [#allocation8], 256
    $region37: #{tpu_custom_call.1} parent=1 // pred_fallthru
      _
    // Predicated region
    $region38: #{tpu_custom_call.1} parent=1 // pred_check
      _
    $region39: #{tpu_custom_call.1} parent=1 // pred_check_branch
      %96 = sbr.rel (0) target = $region41
    $region40: #{tpu_custom_call.1} parent=1 // pred_region
      %97 = dma.done [#allocation8], 256
    $region41: #{tpu_custom_call.1} parent=1 // pred_fallthru
      _
    %s98 = sadd.s32 0, 0
    %s99 = smul.u32 2, %s98
    %s100 = sadd.s32 0, 0
    %s101 = smul.u32 2, %s100
    %s102 = sadd.s32 0, 0
    %s103 = smul.u32 2, %s102
    %s104 = sadd.s32 0, 0
    %s105 = smul.u32 2, %s104
    %s106 = sadd.s32 0, 0
    %s107 = smul.u32 2, %s106
    %p108 = scmp.eq.s32.totalorder 0, 0
    // Predicated region
    $region42: #{tpu_custom_call.1} parent=1 // pred_check
      %p109 = pneg %p108
    $region43: #{tpu_custom_call.1} parent=1 // pred_check_branch
      %111 = sbr.rel (%p109) target = $region45
    $region44: #{tpu_custom_call.1} parent=1 // pred_region
      %vm112 = vcmask 39936
      %113 = vst.msk [vmem:[%s5] sm:$0xff] %vm112, 0.0
    $region45: #{tpu_custom_call.1} parent=1 // pred_fallthru
      _
    %v114 = vld [vmem:[#allocation2] sm:$0xff]
    %v115 = vld [vmem:[#allocation2 + $0x8] sm:$0xff]
    %v116 = vadd.f32 %v114, %v115
    %117 = vadd.xlane.f32.xlu0 %v116
    %v118 = vpop.xlane.xlu0 %117
    %v119 = vld [vmem:[#allocation4] sm:$0xff]
    %v120 = vld [vmem:[#allocation4 + $0x8] sm:$0xff]
    %v121 = vadd.f32 %v119, %v120
    %122 = vadd.xlane.f32.xlu0 %v121
    %v123 = vpop.xlane.xlu0 %122
    %v124 = vld [vmem:[#allocation6] sm:$0xff]
    %v125 = vld [vmem:[#allocation6 + $0x8] sm:$0xff]
    %v126 = vadd.f32 %v124, %v125
    %127 = vadd.xlane.f32.xlu0 %v126
    %v128 = vpop.xlane.xlu0 %127
    %v129 = vld [vmem:[#allocation7] sm:$0xff]
    %v130 = vld [vmem:[#allocation7 + $0x8] sm:$0xff]
    %v131 = vadd.f32 %v129, %v130
    %132 = vadd.xlane.f32.xlu0 %v131
    %v133 = vpop.xlane.xlu0 %132
    %v134 = vld [vmem:[#allocation9] sm:$0xff]
    %v135 = vld [vmem:[#allocation9 + $0x8] sm:$0xff]
    %v136 = vadd.f32 %v134, %v135
    %137 = vadd.xlane.f32.xlu0 %v136
    %v138 = vpop.xlane.xlu0 %137
    %v139 = vld [vmem:[%s5] sm:$0xff]
    %vm140 = vcmask 7168
    %v141 = vsel %vm140, %v118, %v123
    %vm142 = vcmask 15360
    %v143 = vsel %vm142, %v141, %v128
    %vm144 = vcmask 23552
    %v145 = vsel %vm144, %v143, %v133
    %vm146 = vcmask 31744
    %v147 = vsel %vm146, %v145, %v138
    %v148 = vadd.f32 %v139, %v147
    %vm149 = vcmask 39936
    %150 = vst.msk [vmem:[%s5] sm:$0xff] %vm149, %v148
    // Predicated region
    $region46: #{tpu_custom_call.1} parent=1 // pred_check
      _
    $region47: #{tpu_custom_call.1} parent=1 // pred_check_branch
      %152 = sbr.rel (0) target = $region49
    $region48: #{tpu_custom_call.1} parent=1 // pred_region
      _
    $region49: #{tpu_custom_call.1} parent=1 // pred_fallthru
      _
    // Predicated region
    $region50: #{tpu_custom_call.1} parent=1 // pred_check
      _
    $region51: #{tpu_custom_call.1} parent=1 // pred_check_branch
      %154 = sbr.rel (0) target = $region53
    $region52: #{tpu_custom_call.1} parent=1 // pred_region
      _
    $region53: #{tpu_custom_call.1} parent=1 // pred_fallthru
      _
    %155 = vsyncpa [#allocation3], 1
    %156 = vsyncpa [#allocation5], 1
    %157 = vsyncpa [#allocation8], 1

</llo_original>
